<compile_context>
chip_gen: v6e
topology: v6e:2x2x1
jax: 0.10.0
libtpu: 0.0.40
codegen_flags: <defaults>
</compile_context>

<pallas_src>
import functools

import jax
import jax.numpy as jnp
from jax.experimental import pallas as pl
from jax.experimental.pallas import tpu as pltpu

# Deterministic parameters of the wrapped elementwise `fn`.
GAMMA = 1.5
BETA = -0.25

# ~4 MiB tiles: the ~0.35 us fixed per-step overhead is <6% even at v7x HBM
# speeds, and the double-buffered 2-in + 2-out working set (~16 MiB) fits the
# explicit vmem limit set below on every generation.
_TARGET_TILE_BYTES = 4 * 1024 * 1024


def _fn_elementwise(x):
    """The `fn` wrapped by RandomApply (deterministic color-jitter-like op)."""
    return x * GAMMA + BETA


def _apply_kernel(x_ref, o_ref):
    # Branchless elementwise transform. GAMMA/BETA are weakly typed Python
    # floats, so bf16 inputs stay bf16 through the VPU (half the HBM bytes on
    # this mem-bound kernel; tiny numeric delta vs an f32 reference is
    # acceptable for an augmentation).
    o_ref[...] = (x_ref[...] * GAMMA + BETA).astype(o_ref.dtype)


def _choose_lane_width(total):
    """Pick a lane-dense width L (multiple of 128) for the flattened slab."""
    candidates = (4096, 2048, 1024, 512, 256, 128)
    for lane in candidates:                 # prefer >= 8 rows (dense sublanes)
        if total % lane == 0 and total // lane >= 8:
            return lane
    for lane in candidates:                 # any exact divisor (no padding)
        if total % lane == 0:
            return lane
    return 1024                             # ragged total -> tail padding


def _choose_tile_rows(rows, lane, itemsize, target_bytes):
    """Row-tile: multiple of the sublane packing (or == rows), ~target bytes."""
    min_sub = max(1, 32 // itemsize)        # 8 f32 / 16 bf16 / 32 int8-fp8
    if rows <= min_sub:
        return rows                         # block == full rows dim -> legal
    row_bytes = lane * itemsize
    t = (target_bytes // row_bytes) // min_sub * min_sub
    t = max(min_sub, t)
    if t >= rows:
        return rows if rows % min_sub == 0 else (rows // min_sub) * min_sub
    return int(t)


def _dimension_semantics():
    # v7x has 2 TensorCores per chip: split the (single) row-tile grid axis
    # across them so the kernel sees full-chip HBM bandwidth.  Elsewhere the
    # portable "parallel" semantic is used.
    try:
        kind = jax.devices()[0].device_kind.lower()
    except Exception:
        kind = ""
    if "v7" in kind:
        return (pltpu.CORE_PARALLEL,)
    return ("parallel",)


def _apply_impl(x, tile_bytes, alias):
    orig_shape = x.shape
    total = x.size
    itemsize = x.dtype.itemsize

    lane = _choose_lane_width(total)
    pad = (-total) % lane

    flat = x.reshape(-1)                    # free metadata reshape (elementwise op)
    if pad:
        flat = jnp.pad(flat, (0, pad))      # only when numel is not a 128-multiple
    rows = (total + pad) // lane
    x2 = flat.reshape(rows, lane)

    tile_r = _choose_tile_rows(rows, lane, itemsize, tile_bytes)
    grid = (pl.cdiv(rows, tile_r),)
    tile_nbytes = tile_r * lane * itemsize

    # Cover the double-buffered 2-in + 2-out working set plus headroom; never
    # below the smallest default (v5e) and capped for v7x's 64 MiB VMEM.
    vmem_limit = min(max(4 * tile_nbytes + (2 << 20), 16 << 20), 32 << 20)

    cost = pl.CostEstimate(
        flops=2 * rows * lane,                        # 1 mul + 1 add / elem
        transcendentals=0,
        bytes_accessed=2 * rows * lane * itemsize,    # read + write
    )

    out2 = pl.pallas_call(
        _apply_kernel,
        out_shape=jax.ShapeDtypeStruct((rows, lane), x.dtype),
        grid=grid,
        in_specs=[pl.BlockSpec((tile_r, lane), lambda i: (i, 0))],
        out_specs=pl.BlockSpec((tile_r, lane), lambda i: (i, 0)),
        input_output_aliases={0: 0} if alias else {},
        compiler_params=pltpu.CompilerParams(
            dimension_semantics=_dimension_semantics(),
            vmem_limit_bytes=int(vmem_limit),
        ),
        cost_estimate=cost,
    )(x2)

    out_flat = out2.reshape(-1)
    if pad:
        out_flat = out_flat[:total]
    return out_flat.reshape(orig_shape)


@functools.partial(jax.jit, static_argnames=("tile_bytes",))
def _apply_jit(x, tile_bytes):
    return _apply_impl(x, tile_bytes, alias=False)


# Donating variant: the output reuses the input HBM buffer (in-kernel aliasing
# plus donation at the jit boundary).  The caller must not reuse x afterwards.
@functools.partial(jax.jit, static_argnames=("tile_bytes",), donate_argnums=(0,))
def _apply_jit_donated(x, tile_bytes):
    return _apply_impl(x, tile_bytes, alias=True)


def random_apply(x, p, key, *, target_tile_bytes=_TARGET_TILE_BYTES,
                 donate=False):
    """Pallas implementation of RandomApply(fn, p).forward(x).

    x:      input array (e.g. NCHW images)
    p:      probability of applying fn
    key:    jax PRNG key standing in for python's `random.random()`
    donate: if True, x's HBM buffer is donated and reused for the output
            (x must not be used by the caller afterwards).
    """
    # Host-side Bernoulli decision matching the eager `random.random() > p`:
    # the identity path launches nothing at all and returns x itself.
    u = float(jax.random.uniform(key))
    if u > p:
        return x
    apply_fn = _apply_jit_donated if donate else _apply_jit
    return apply_fn(x, tile_bytes=int(target_tile_bytes))


if __name__ == "__main__":
    key = jax.random.PRNGKey(0)
    k_x, k_decide, k_big, k_odd = jax.random.split(key, 4)

    # --- Primary check: small NCHW input, probabilistic decision ------------
    x = jax.random.uniform(k_x, (2, 4, 16, 16), dtype=jnp.float32)
    p = 0.8
    u = float(jax.random.uniform(k_decide))      # same decision the wrapper makes
    out = jax.block_until_ready(random_apply(x, p, k_decide))
    ref = _fn_elementwise(x) if u <= p else x
    assert out.shape == x.shape and out.dtype == x.dtype
    assert jnp.allclose(out, ref, atol=1e-6), "mismatch vs reference (p=0.8)"

    # --- Identity path (p=0): returns x itself, nothing launched ------------
    out_id = random_apply(x, 0.0, k_decide)
    assert out_id is x, "identity path must return the input object unchanged"

    # --- Apply path (p=1): multi-tile grid + donated (aliased) output -------
    x_big = jax.random.uniform(k_big, (2, 8, 32, 128), dtype=jnp.float32)
    ref_big = jax.block_until_ready(_fn_elementwise(x_big))   # before donation
    out_big = jax.block_until_ready(
        random_apply(x_big, 1.0, k_big, donate=True,
                     target_tile_bytes=64 * 1024)             # force >1 tile
    )
    assert out_big.shape == ref_big.shape
    assert jnp.allclose(out_big, ref_big, atol=1e-6), \
        "mismatch vs reference on tiled/donated path"

    # --- Ragged element count (not a multiple of 128): padding path ---------
    x_odd = jax.random.uniform(k_odd, (1, 3, 5, 7), dtype=jnp.float32)
    out_odd = jax.block_until_ready(random_apply(x_odd, 1.0, k_odd))
    assert jnp.allclose(out_odd, _fn_elementwise(x_odd), atol=1e-6), \
        "mismatch vs reference on lane-padded path"

    print("KERNEL_OK")
</pallas_src>

<mosaic_0001>
module attributes {stable_mosaic.version = 11 : i64} {
  func.func @_apply_kernel(%arg0: i32, %arg1: memref<8x256xf32, #tpu.memory_space<vmem>>, %arg2: memref<8x256xf32, #tpu.memory_space<vmem>>) attributes {dimension_semantics = [#tpu.dimension_semantics<parallel>], iteration_bounds = array<i64: 1>, scalar_prefetch = 0 : i64, scratch_operands = 0 : i64, tpu.core_type = #tpu.core_type<tc>, window_params = [{transform_indices = @transform_0, window_bounds = array<i64: 8, 256>}, {transform_indices = @transform_1, window_bounds = array<i64: 8, 256>}]} {
    %c0 = arith.constant 0 : index
    %c0_0 = arith.constant 0 : index
    %0 = vector.load %arg1[%c0, %c0_0] : memref<8x256xf32, #tpu.memory_space<vmem>>, vector<8x256xf32>
    %cst = arith.constant 1.500000e+00 : f32
    %1 = vector.broadcast %cst : f32 to vector<8x256xf32>
    %2 = arith.mulf %0, %1 : vector<8x256xf32>
    %cst_1 = arith.constant -2.500000e-01 : f32
    %3 = vector.broadcast %cst_1 : f32 to vector<8x256xf32>
    %4 = arith.addf %2, %3 : vector<8x256xf32>
    %c0_2 = arith.constant 0 : index
    %c0_3 = arith.constant 0 : index
    %5 = vector.load %arg2[%c0_2, %c0_3] : memref<8x256xf32, #tpu.memory_space<vmem>>, vector<8x256xf32>
    tpu.vector_store %arg2[%c0_2, %c0_3], %4 {strides = array<i32>} : memref<8x256xf32, #tpu.memory_space<vmem>>, vector<8x256xf32>,
    return
  }
  func.func @transform_0(%arg0: i32) -> (i32, i32) {
    %c0_i32 = arith.constant 0 : i32
    %c0_i32_0 = arith.constant 0 : i32
    return %arg0, %c0_i32 : i32, i32
  }
  func.func @transform_1(%arg0: i32) -> (i32, i32) {
    %c0_i32 = arith.constant 0 : i32
    %c0_i32_0 = arith.constant 0 : i32
    return %arg0, %c0_i32 : i32, i32
  }
}

</mosaic_0001>

<llo_original>
// kernel: _apply_jit.1
$region0: #{_apply_jit.1}
  #allocation0 [shape = 'u32[]', space=smem, size = 0x4, offset = 0x4, fixed_abs, tag = 'smem constant byte address 0x4 - core index']
  #allocation1 [shape = 'u32[144,128]{1,0:T(1,128)}', space=vmem, size = 0x12000, scoped, tag = 'internal scratch']
  %s0 = inlined_call_operand.vmem [shape: f32[8,256], index: 0, kind: input, shape index: {}]
  %s1 = inlined_call_operand.vmem [shape: f32[8,256], index: 1, kind: output, shape index: {}]
  %s2 = sld [smem:[#allocation0]]
  $region14: #{_apply_jit.1} parent=0
    _
  %s4 = ssub.s32 1, %s2
  %s5 = scalar_select 0, %s4, %s2
  // Predicated region
  $region2: #{_apply_jit.1} parent=0 // pred_check
    _
  $region3: #{_apply_jit.1} parent=0 // pred_check_branch
    %7 = sbr.rel (0) target = $region5
  $region4: #{_apply_jit.1} parent=0 // pred_region
    _
  $region5: #{_apply_jit.1} parent=0 // pred_fallthru
    _
  %v8 = vld [vmem:[%s0] sm:$0xff]
  %v9 = vld [vmem:[%s0 + $0x8] sm:$0xff]
  %v10 = vmul.f32 %v8, 1.5
  %v11 = vmul.f32 %v9, 1.5
  %v12 = vadd.f32 %v10, -0.25
  %v13 = vadd.f32 %v11, -0.25
  %14 = vst [vmem:[%s1] sm:$0xff] %v12
  %15 = vst [vmem:[%s1 + $0x8] sm:$0xff] %v13
  // Predicated region
  $region6: #{_apply_jit.1} parent=0 // pred_check
    _
  $region7: #{_apply_jit.1} parent=0 // pred_check_branch
    %17 = sbr.rel (0) target = $region9
  $region8: #{_apply_jit.1} parent=0 // pred_region
    _
  $region9: #{_apply_jit.1} parent=0 // pred_fallthru
    _
  // Predicated region
  $region10: #{_apply_jit.1} parent=0 // pred_check
    _
  $region11: #{_apply_jit.1} parent=0 // pred_check_branch
    %19 = sbr.rel (0) target = $region13
  $region12: #{_apply_jit.1} parent=0 // pred_region
    _
  $region13: #{_apply_jit.1} parent=0 // pred_fallthru
    _

</llo_original>
